<compile_context>
chip_gen: v5e
topology: v5e:2x2
jax: 0.10.0
libtpu: 0.0.40
codegen_flags: <defaults>
</compile_context>

<pallas_src>
import jax
import jax.numpy as jnp
from jax.experimental import pallas as pl
from jax.experimental.pallas import tpu as pltpu


def _matmul_kernel(a_ref, b_ref, o_ref):
    # Single-shot MXU matmul on the full (unpadded) operands, all in VMEM.
    # Mosaic pads the sub-(8,128) tiles in-register at zero HBM cost.
    o_ref[...] = jnp.dot(
        a_ref[...],
        b_ref[...],
        preferred_element_type=jnp.float32,
        precision=jax.lax.Precision.HIGHEST,
    ).astype(o_ref.dtype)


def model_forward(x1: jax.Array, other: jax.Array) -> jax.Array:
    """Equivalent of Model.forward: x1.view(B, -1) @ other."""
    B = x1.shape[0]
    v1 = x1.reshape(B, -1)                      # (B, S*D) -- glue reshape
    M, K = v1.shape
    K2, N = other.shape
    assert K == K2, f"inner dims mismatch: {K} vs {K2}"

    # Accurate hint for the XLA scheduler: true logical work, not padded work.
    cost = pl.CostEstimate(
        flops=2 * M * K * N,
        transcendentals=0,
        bytes_accessed=(M * K + K * N + M * N) * v1.dtype.itemsize,
    )

    return pl.pallas_call(
        _matmul_kernel,
        out_shape=jax.ShapeDtypeStruct((M, N), v1.dtype),
        # Grid-less call: whole arrays are placed in VMEM, the kernel body
        # runs exactly once -- no grid loop, no scalar prefetch, no padding.
        in_specs=[
            pl.BlockSpec(memory_space=pltpu.MemorySpace.VMEM),
            pl.BlockSpec(memory_space=pltpu.MemorySpace.VMEM),
        ],
        out_specs=pl.BlockSpec(memory_space=pltpu.MemorySpace.VMEM),
        cost_estimate=cost,
    )(v1, other)


if __name__ == "__main__":
    key = jax.random.PRNGKey(0)
    k1, k2 = jax.random.split(key)

    # Shapes consistent with the module: x1 is (1, 10, 8) -> flattened K = 80.
    B, S, D = 1, 10, 8
    N = 32  # output feature dim for `other`

    x1 = jax.random.normal(k1, (B, S, D), dtype=jnp.float32)
    other = jax.random.normal(k2, (S * D, N), dtype=jnp.float32)

    out = model_forward(x1, other)
    out = jax.block_until_ready(out)

    # Sanity check against plain-JAX reference (highest precision).
    ref = jnp.dot(
        x1.reshape(B, -1), other, precision=jax.lax.Precision.HIGHEST
    )
    assert out.shape == (B, N)
    assert jnp.allclose(out, ref, atol=1e-5, rtol=1e-5), "mismatch vs reference"

    print("KERNEL_OK")
</pallas_src>

<mosaic_0001>
module attributes {stable_mosaic.version = 11 : i64} {
  func.func @_matmul_kernel(%arg0: memref<1x80xf32, #tpu.memory_space<vmem>>, %arg1: memref<80x32xf32, #tpu.memory_space<vmem>>, %arg2: memref<1x32xf32, #tpu.memory_space<vmem>>) attributes {dimension_semantics = [], scalar_prefetch = 0 : i64, scratch_operands = 0 : i64, tpu.core_type = #tpu.core_type<tc>} {
    %c0 = arith.constant 0 : index
    %c0_0 = arith.constant 0 : index
    %0 = vector.load %arg0[%c0, %c0_0] : memref<1x80xf32, #tpu.memory_space<vmem>>, vector<1x80xf32>
    %c0_1 = arith.constant 0 : index
    %c0_2 = arith.constant 0 : index
    %1 = vector.load %arg1[%c0_1, %c0_2] : memref<80x32xf32, #tpu.memory_space<vmem>>, vector<80x32xf32>
    %cst = arith.constant dense<0.000000e+00> : vector<1x32xf32>
    %2 = tpu.matmul %0, %1, %cst {dimension_numbers = #tpu.dot_dimension_numbers<[1], [0], [0], [1], [0, 0, 1, 1], [], []>, precision = #tpu.contract_precision<fp32>} : vector<1x80xf32>, vector<80x32xf32>, vector<1x32xf32> -> vector<1x32xf32>
    %c0_3 = arith.constant 0 : index
    %c0_4 = arith.constant 0 : index
    %3 = vector.load %arg2[%c0_3, %c0_4] : memref<1x32xf32, #tpu.memory_space<vmem>>, vector<1x32xf32>
    tpu.vector_store %arg2[%c0_3, %c0_4], %2 {strides = array<i32>} : memref<1x32xf32, #tpu.memory_space<vmem>>, vector<1x32xf32>,
    return
  }
}

</mosaic_0001>

<llo_original>
// kernel: tpu_custom_call.1
$region0: #{tpu_custom_call.1}
  #allocation0 [shape = 'u32[]', space=smem, size = 0x4, offset = 0x4, fixed_abs, tag = 'smem constant byte address 0x4 - core index']
  #allocation1 [shape = 'u32[72,128]{1,0:T(1,128)}', space=vmem, size = 0x9000, scoped, tag = 'internal scratch']
  %s0 = inlined_call_operand.vmem [shape: f32[1,80], index: 0, kind: input, shape index: {}]
  %s1 = inlined_call_operand.vmem [shape: f32[80,32], index: 1, kind: input, shape index: {}]
  %s2 = inlined_call_operand.hbm [shape: f32[1,32], index: 2, kind: output, shape index: {}]
  %s3 = sld [smem:[#allocation0]]
  $region18: #{tpu_custom_call.1} parent=0
    _
  %s5 = ssub.s32 1, %s3
  %s6 = scalar_select 0, %s5, %s3
  $region1: #{tpu_custom_call.1} parent=0
    #allocation2 [shape = 'u8[512]{0}', space=vmem, size = 0x400, scoped, tag = 'output window, operand 0, single buffered']
    #allocation3 [shape = 's32[1]{0}', space=sflag, size = 0x4, scoped, tag = 'scoped memory for tpu_custom_call.1']
    %7 = vsyncpa [#allocation3], 0
    // Predicated region
    $region2: #{tpu_custom_call.1} parent=1 // pred_check
      _
    $region3: #{tpu_custom_call.1} parent=1 // pred_check_branch
      %9 = sbr.rel (0) target = $region5
    $region4: #{tpu_custom_call.1} parent=1 // pred_region
      _
    $region5: #{tpu_custom_call.1} parent=1 // pred_fallthru
      _
    // Predicated region
    $region6: #{tpu_custom_call.1} parent=1 // pred_check
      _
    $region7: #{tpu_custom_call.1} parent=1 // pred_check_branch
      %11 = sbr.rel (0) target = $region9
    $region8: #{tpu_custom_call.1} parent=1 // pred_region
      _
    $region9: #{tpu_custom_call.1} parent=1 // pred_fallthru
      _
    %v12 = vld [vmem:[%s0] sm:$0x1]
    %v13 = vld [vmem:[%s1] sm:$0xff]
    %v14 = vld [vmem:[%s1 + $0x8] sm:$0xff]
    %v15 = vld [vmem:[%s1 + $0x10] sm:$0xff]
    %v16 = vld [vmem:[%s1 + $0x18] sm:$0xff]
    %v17 = vld [vmem:[%s1 + $0x20] sm:$0xff]
    %v18 = vld [vmem:[%s1 + $0x28] sm:$0xff]
    %v19 = vld [vmem:[%s1 + $0x30] sm:$0xff]
    %v20 = vld [vmem:[%s1 + $0x38] sm:$0xff]
    %v21 = vld [vmem:[%s1 + $0x40] sm:$0xff]
    %v22 = vld [vmem:[%s1 + $0x48] sm:$0xff]
    %vm23 = vcmask 654336
    %v25 = vsel %vm23, %v12, 0
    %27 = vmatpush.msra.mxu0 0.0
    %28 = vmatpush.msra.mxu0 0.0
    %29 = vmatpush.msra.mxu0 0.0
    %30 = vmatpush.msra.mxu0 0.0
    %31 = vmatpush.msra.mxu0 0.0
    %32 = vmatpush.msra.mxu0 0.0
    %v33 = vand.u32 %v22, 4294901760
    %34 = vmatpush.msra.mxu0 %v33
    %v35 = vand.u32 %v21, 4294901760
    %36 = vmatpush.msra.mxu0 %v35
    %v37 = vand.u32 %v20, 4294901760
    %38 = vmatpush.msra.mxu0 %v37
    %v39 = vand.u32 %v19, 4294901760
    %40 = vmatpush.msra.mxu0 %v39
    %v41 = vand.u32 %v18, 4294901760
    %42 = vmatpush.msra.mxu0 %v41
    %v43 = vand.u32 %v17, 4294901760
    %44 = vmatpush.msra.mxu0 %v43
    %v45 = vand.u32 %v16, 4294901760
    %46 = vmatpush.msra.mxu0 %v45
    %v47 = vand.u32 %v15, 4294901760
    %48 = vmatpush.msra.mxu0 %v47
    %v49 = vand.u32 %v14, 4294901760
    %50 = vmatpush.msra.mxu0 %v49
    %v51 = vand.u32 %v13, 4294901760
    %52 = vmatpush.msra.mxu0 %v51
    %v53 = vand.u32 %v25, 4294901760
    %v54 = vsub.f32 %v25, %v53
    %v55 = vand.u32 %v54, 4294901760
    %v56 = vsub.f32 %v54, %v55
    %v57 = vand.u32 %v56, 4294901760
    %58 = vmatmul.f32.gmra.mxu0 %v57
    %v59 = vpop.f32.mrf.mxu0
    %v60 = vadd.f32 0.0, %v59
    %61 = vdwg.mxu0
    %62 = vmatpush.msra.mxu0 0.0
    %63 = vmatpush.msra.mxu0 0.0
    %64 = vmatpush.msra.mxu0 0.0
    %65 = vmatpush.msra.mxu0 0.0
    %66 = vmatpush.msra.mxu0 0.0
    %67 = vmatpush.msra.mxu0 0.0
    %v68 = vand.u32 %v22, 4294901760
    %v69 = vsub.f32 %v22, %v68
    %v70 = vand.u32 %v69, 4294901760
    %v71 = vsub.f32 %v69, %v70
    %v72 = vand.u32 %v71, 4294901760
    %73 = vmatpush.msra.mxu0 %v72
    %v74 = vand.u32 %v21, 4294901760
    %v75 = vsub.f32 %v21, %v74
    %v76 = vand.u32 %v75, 4294901760
    %v77 = vsub.f32 %v75, %v76
    %v78 = vand.u32 %v77, 4294901760
    %79 = vmatpush.msra.mxu0 %v78
    %v80 = vand.u32 %v20, 4294901760
    %v81 = vsub.f32 %v20, %v80
    %v82 = vand.u32 %v81, 4294901760
    %v83 = vsub.f32 %v81, %v82
    %v84 = vand.u32 %v83, 4294901760
    %85 = vmatpush.msra.mxu0 %v84
    %v86 = vand.u32 %v19, 4294901760
    %v87 = vsub.f32 %v19, %v86
    %v88 = vand.u32 %v87, 4294901760
    %v89 = vsub.f32 %v87, %v88
    %v90 = vand.u32 %v89, 4294901760
    %91 = vmatpush.msra.mxu0 %v90
    %v92 = vand.u32 %v18, 4294901760
    %v93 = vsub.f32 %v18, %v92
    %v94 = vand.u32 %v93, 4294901760
    %v95 = vsub.f32 %v93, %v94
    %v96 = vand.u32 %v95, 4294901760
    %97 = vmatpush.msra.mxu0 %v96
    %v98 = vand.u32 %v17, 4294901760
    %v99 = vsub.f32 %v17, %v98
    %v100 = vand.u32 %v99, 4294901760
    %v101 = vsub.f32 %v99, %v100
    %v102 = vand.u32 %v101, 4294901760
    %103 = vmatpush.msra.mxu0 %v102
    %v104 = vand.u32 %v16, 4294901760
    %v105 = vsub.f32 %v16, %v104
    %v106 = vand.u32 %v105, 4294901760
    %v107 = vsub.f32 %v105, %v106
    %v108 = vand.u32 %v107, 4294901760
    %109 = vmatpush.msra.mxu0 %v108
    %v110 = vand.u32 %v15, 4294901760
    %v111 = vsub.f32 %v15, %v110
    %v112 = vand.u32 %v111, 4294901760
    %v113 = vsub.f32 %v111, %v112
    %v114 = vand.u32 %v113, 4294901760
    %115 = vmatpush.msra.mxu0 %v114
    %v116 = vand.u32 %v14, 4294901760
    %v117 = vsub.f32 %v14, %v116
    %v118 = vand.u32 %v117, 4294901760
    %v119 = vsub.f32 %v117, %v118
    %v120 = vand.u32 %v119, 4294901760
    %121 = vmatpush.msra.mxu0 %v120
    %v122 = vand.u32 %v13, 4294901760
    %v123 = vsub.f32 %v13, %v122
    %v124 = vand.u32 %v123, 4294901760
    %v125 = vsub.f32 %v123, %v124
    %v126 = vand.u32 %v125, 4294901760
    %127 = vmatpush.msra.mxu0 %v126
    %v128 = vand.u32 %v25, 4294901760
    %129 = vmatmul.f32.gmra.mxu0 %v128
    %v130 = vpop.f32.mrf.mxu0
    %v131 = vadd.f32 %v60, %v130
    %132 = vdwg.mxu0
    %133 = vmatpush.msra.mxu0 0.0
    %134 = vmatpush.msra.mxu0 0.0
    %135 = vmatpush.msra.mxu0 0.0
    %136 = vmatpush.msra.mxu0 0.0
    %137 = vmatpush.msra.mxu0 0.0
    %138 = vmatpush.msra.mxu0 0.0
    %v139 = vand.u32 %v22, 4294901760
    %v140 = vsub.f32 %v22, %v139
    %141 = vmatpush.msra.mxu0 %v140
    %v142 = vand.u32 %v21, 4294901760
    %v143 = vsub.f32 %v21, %v142
    %144 = vmatpush.msra.mxu0 %v143
    %v145 = vand.u32 %v20, 4294901760
    %v146 = vsub.f32 %v20, %v145
    %147 = vmatpush.msra.mxu0 %v146
    %v148 = vand.u32 %v19, 4294901760
    %v149 = vsub.f32 %v19, %v148
    %150 = vmatpush.msra.mxu0 %v149
    %v151 = vand.u32 %v18, 4294901760
    %v152 = vsub.f32 %v18, %v151
    %153 = vmatpush.msra.mxu0 %v152
    %v154 = vand.u32 %v17, 4294901760
    %v155 = vsub.f32 %v17, %v154
    %156 = vmatpush.msra.mxu0 %v155
    %v157 = vand.u32 %v16, 4294901760
    %v158 = vsub.f32 %v16, %v157
    %159 = vmatpush.msra.mxu0 %v158
    %v160 = vand.u32 %v15, 4294901760
    %v161 = vsub.f32 %v15, %v160
    %162 = vmatpush.msra.mxu0 %v161
    %v163 = vand.u32 %v14, 4294901760
    %v164 = vsub.f32 %v14, %v163
    %165 = vmatpush.msra.mxu0 %v164
    %v166 = vand.u32 %v13, 4294901760
    %v167 = vsub.f32 %v13, %v166
    %168 = vmatpush.msra.mxu0 %v167
    %v169 = vand.u32 %v25, 4294901760
    %v170 = vsub.f32 %v25, %v169
    %171 = vmatmul.f32.gmra.mxu0 %v170
    %v172 = vpop.f32.mrf.mxu0
    %v173 = vadd.f32 %v131, %v172
    %174 = vdwg.mxu0
    %175 = vmatpush.msra.mxu0 0.0
    %176 = vmatpush.msra.mxu0 0.0
    %177 = vmatpush.msra.mxu0 0.0
    %178 = vmatpush.msra.mxu0 0.0
    %179 = vmatpush.msra.mxu0 0.0
    %180 = vmatpush.msra.mxu0 0.0
    %v181 = vand.u32 %v22, 4294901760
    %182 = vmatpush.msra.mxu0 %v181
    %v183 = vand.u32 %v21, 4294901760
    %184 = vmatpush.msra.mxu0 %v183
    %v185 = vand.u32 %v20, 4294901760
    %186 = vmatpush.msra.mxu0 %v185
    %v187 = vand.u32 %v19, 4294901760
    %188 = vmatpush.msra.mxu0 %v187
    %v189 = vand.u32 %v18, 4294901760
    %190 = vmatpush.msra.mxu0 %v189
    %v191 = vand.u32 %v17, 4294901760
    %192 = vmatpush.msra.mxu0 %v191
    %v193 = vand.u32 %v16, 4294901760
    %194 = vmatpush.msra.mxu0 %v193
    %v195 = vand.u32 %v15, 4294901760
    %196 = vmatpush.msra.mxu0 %v195
    %v197 = vand.u32 %v14, 4294901760
    %198 = vmatpush.msra.mxu0 %v197
    %v199 = vand.u32 %v13, 4294901760
    %200 = vmatpush.msra.mxu0 %v199
    %v201 = vand.u32 %v25, 4294901760
    %v202 = vsub.f32 %v25, %v201
    %v203 = vand.u32 %v202, 4294901760
    %204 = vmatmul.f32.gmra.mxu0 %v203
    %v205 = vpop.f32.mrf.mxu0
    %v206 = vadd.f32 %v173, %v205
    %207 = vdwg.mxu0
    %208 = vmatpush.msra.mxu0 0.0
    %209 = vmatpush.msra.mxu0 0.0
    %210 = vmatpush.msra.mxu0 0.0
    %211 = vmatpush.msra.mxu0 0.0
    %212 = vmatpush.msra.mxu0 0.0
    %213 = vmatpush.msra.mxu0 0.0
    %v214 = vand.u32 %v22, 4294901760
    %v215 = vsub.f32 %v22, %v214
    %v216 = vand.u32 %v215, 4294901760
    %217 = vmatpush.msra.mxu0 %v216
    %v218 = vand.u32 %v21, 4294901760
    %v219 = vsub.f32 %v21, %v218
    %v220 = vand.u32 %v219, 4294901760
    %221 = vmatpush.msra.mxu0 %v220
    %v222 = vand.u32 %v20, 4294901760
    %v223 = vsub.f32 %v20, %v222
    %v224 = vand.u32 %v223, 4294901760
    %225 = vmatpush.msra.mxu0 %v224
    %v226 = vand.u32 %v19, 4294901760
    %v227 = vsub.f32 %v19, %v226
    %v228 = vand.u32 %v227, 4294901760
    %229 = vmatpush.msra.mxu0 %v228
    %v230 = vand.u32 %v18, 4294901760
    %v231 = vsub.f32 %v18, %v230
    %v232 = vand.u32 %v231, 4294901760
    %233 = vmatpush.msra.mxu0 %v232
    %v234 = vand.u32 %v17, 4294901760
    %v235 = vsub.f32 %v17, %v234
    %v236 = vand.u32 %v235, 4294901760
    %237 = vmatpush.msra.mxu0 %v236
    %v238 = vand.u32 %v16, 4294901760
    %v239 = vsub.f32 %v16, %v238
    %v240 = vand.u32 %v239, 4294901760
    %241 = vmatpush.msra.mxu0 %v240
    %v242 = vand.u32 %v15, 4294901760
    %v243 = vsub.f32 %v15, %v242
    %v244 = vand.u32 %v243, 4294901760
    %245 = vmatpush.msra.mxu0 %v244
    %v246 = vand.u32 %v14, 4294901760
    %v247 = vsub.f32 %v14, %v246
    %v248 = vand.u32 %v247, 4294901760
    %249 = vmatpush.msra.mxu0 %v248
    %v250 = vand.u32 %v13, 4294901760
    %v251 = vsub.f32 %v13, %v250
    %v252 = vand.u32 %v251, 4294901760
    %253 = vmatpush.msra.mxu0 %v252
    %v254 = vand.u32 %v25, 4294901760
    %255 = vmatmul.f32.gmra.mxu0 %v254
    %v256 = vpop.f32.mrf.mxu0
    %v257 = vadd.f32 %v206, %v256
    %258 = vdwg.mxu0
    %259 = vmatpush.msra.mxu0 0.0
    %260 = vmatpush.msra.mxu0 0.0
    %261 = vmatpush.msra.mxu0 0.0
    %262 = vmatpush.msra.mxu0 0.0
    %263 = vmatpush.msra.mxu0 0.0
    %264 = vmatpush.msra.mxu0 0.0
    %v265 = vand.u32 %v22, 4294901760
    %266 = vmatpush.msra.mxu0 %v265
    %v267 = vand.u32 %v21, 4294901760
    %268 = vmatpush.msra.mxu0 %v267
    %v269 = vand.u32 %v20, 4294901760
    %270 = vmatpush.msra.mxu0 %v269
    %v271 = vand.u32 %v19, 4294901760
    %272 = vmatpush.msra.mxu0 %v271
    %v273 = vand.u32 %v18, 4294901760
    %274 = vmatpush.msra.mxu0 %v273
    %v275 = vand.u32 %v17, 4294901760
    %276 = vmatpush.msra.mxu0 %v275
    %v277 = vand.u32 %v16, 4294901760
    %278 = vmatpush.msra.mxu0 %v277
    %v279 = vand.u32 %v15, 4294901760
    %280 = vmatpush.msra.mxu0 %v279
    %v281 = vand.u32 %v14, 4294901760
    %282 = vmatpush.msra.mxu0 %v281
    %v283 = vand.u32 %v13, 4294901760
    %284 = vmatpush.msra.mxu0 %v283
    %v285 = vand.u32 %v25, 4294901760
    %286 = vmatmul.f32.gmra.mxu0 %v285
    %v287 = vpop.f32.mrf.mxu0
    %v288 = vadd.f32 %v257, %v287
    %289 = vdwg.mxu0
    %vm290 = vcmask 253952
    %291 = vst.msk [vmem:[#allocation2] sm:$0x1] %vm290, %v288
    // Predicated region
    $region10: #{tpu_custom_call.1} parent=1 // pred_check
      _
    $region11: #{tpu_custom_call.1} parent=1 // pred_check_branch
      %293 = sbr.rel (0) target = $region13
    $region12: #{tpu_custom_call.1} parent=1 // pred_region
      %295 = vsyncadd [#allocation3], 0
      %s297 = sshll.u32 [#allocation2], 4
      %s298 = int_to_ptr.vmem [resolvable:$true] %s297
      %s299 = sshll.u32 %s2, 4
      %s300 = int_to_ptr.hbm [resolvable:$true] %s299
      %302 = dma.vmem_to_hbm [thread:$0]  %s298, 16, %s300, [#allocation3]
    $region13: #{tpu_custom_call.1} parent=1 // pred_fallthru
      _
    // Predicated region
    $region14: #{tpu_custom_call.1} parent=1 // pred_check
      _
    $region15: #{tpu_custom_call.1} parent=1 // pred_check_branch
      %304 = sbr.rel (0) target = $region17
    $region16: #{tpu_custom_call.1} parent=1 // pred_region
      %306 = dma.done [#allocation3], 16
    $region17: #{tpu_custom_call.1} parent=1 // pred_fallthru
      _
    %307 = vsyncpa [#allocation3], 1

</llo_original>
